<compile_context>
chip_gen: v7x
topology: tpu7x:2x2x1
jax: 0.10.0
libtpu: 0.0.40
codegen_flags: <defaults>
</compile_context>

<pallas_src>
import jax
import jax.numpy as jnp
from jax.experimental import pallas as pl
from jax.experimental.pallas import tpu as pltpu


_LANE = 1024                 # lane-dense last dim (multiple of 128)
_TM = 512                    # rows per block -> 512*1024*4 B = 2 MiB / array / block
_MIN_PALLAS_ELEMS = 1 << 16  # below this, plain jnp is faster than a kernel launch


def _weighted_feature_kernel(w_ref, e1_ref, e2_ref, e3_ref, o_ref):
    # w_ref: SMEM (3,) scalar weights; e*_ref / o_ref: VMEM tiles (TM, LANE)
    w1 = w_ref[0]
    w2 = w_ref[1]
    w3 = w_ref[2]
    o_ref[...] = w1 * e1_ref[...] + w2 * e2_ref[...] + w3 * e3_ref[...]


def weighted_feature_pallas(weight, e1, e2, e3):
    """Pallas path. weight: (1,3) or (3,) f32; e1/e2/e3: same-shape f32 arrays."""
    assert e1.shape == e2.shape == e3.shape
    assert e1.dtype == e2.dtype == e3.dtype
    w = jnp.asarray(weight, dtype=jnp.float32).reshape(3)

    orig_shape = e1.shape
    total = e1.size

    # Flatten to a lane-dense 2-D slab [rows, _LANE]; zero-pad the tail if needed.
    padded = pl.cdiv(total, _LANE) * _LANE

    def prep(x):
        flat = x.reshape(-1)
        if padded != total:
            flat = jnp.pad(flat, (0, padded - total))
        return flat.reshape(padded // _LANE, _LANE)

    a, b, c = prep(e1), prep(e2), prep(e3)
    rows = padded // _LANE
    tm = _TM if rows >= _TM else rows          # full-dim block for short slabs
    grid = (pl.cdiv(rows, tm),)

    emb_spec = pl.BlockSpec((tm, _LANE), lambda i: (i, 0))

    out2d = pl.pallas_call(
        _weighted_feature_kernel,
        out_shape=jax.ShapeDtypeStruct((rows, _LANE), e1.dtype),
        grid_spec=pltpu.PrefetchScalarGridSpec(
            num_scalar_prefetch=0,
            grid=grid,
            in_specs=[
                pl.BlockSpec(memory_space=pltpu.SMEM),  # (3,) scalar weights
                emb_spec,
                emb_spec,
                emb_spec,
            ],
            out_specs=emb_spec,
        ),
        compiler_params=pltpu.CompilerParams(
            dimension_semantics=("parallel",),
            vmem_limit_bytes=32 * 1024 * 1024,
        ),
    )(w, a, b, c)

    return out2d.reshape(-1)[:total].reshape(orig_shape)


def weighted_feature(weight, e1, e2, e3):
    """Dispatcher: plain jnp for tiny inputs, pipelined Pallas kernel otherwise."""
    if e1.size < _MIN_PALLAS_ELEMS:
        w = jnp.asarray(weight, dtype=jnp.float32).reshape(3)
        return w[0] * e1 + w[1] * e2 + w[2] * e3
    return weighted_feature_pallas(weight, e1, e2, e3)


def make_weight(a1, a2, a3):
    # Deterministic parameter init mirroring reset_parameters(a1, a2, a3)
    return jnp.array([[a1, a2, a3]], dtype=jnp.float32)


if __name__ == "__main__":
    key = jax.random.PRNGKey(0)
    k1, k2, k3, k4, k5, k6 = jax.random.split(key, 6)

    a1, a2, a3 = 0.5, 0.3, 0.2
    weight = make_weight(a1, a2, a3)   # (1, 3), as in the torch module

    # Small shape consistent with the module (seq=8, hidden=32) — kernel path forced.
    N, D = 8, 32
    e1 = jax.random.normal(k1, (N, D), dtype=jnp.float32)
    e2 = jax.random.normal(k2, (N, D), dtype=jnp.float32)
    e3 = jax.random.normal(k3, (N, D), dtype=jnp.float32)

    out = jax.block_until_ready(weighted_feature_pallas(weight, e1, e2, e3))
    ref = weight[0, 0] * e1 + weight[0, 1] * e2 + weight[0, 2] * e3
    assert out.shape == ref.shape
    assert jnp.allclose(out, ref, atol=1e-6), "mismatch vs reference (small shape)"

    # Second check: exercises the multi-block pipelined path (grid > 1).
    M, H = 1024, 1024
    f1 = jax.random.normal(k4, (M, H), dtype=jnp.float32)
    f2 = jax.random.normal(k5, (M, H), dtype=jnp.float32)
    f3 = jax.random.normal(k6, (M, H), dtype=jnp.float32)

    out2 = jax.block_until_ready(weighted_feature(weight, f1, f2, f3))
    ref2 = weight[0, 0] * f1 + weight[0, 1] * f2 + weight[0, 2] * f3
    assert jnp.allclose(out2, ref2, atol=1e-5), "mismatch vs reference (tiled shape)"

    print("KERNEL_OK")
</pallas_src>

<mosaic_0001>
module attributes {stable_mosaic.version = 11 : i64} {
  func.func @_weighted_feature_kernel(%arg0: i32, %arg1: memref<3xf32, #tpu.memory_space<smem>>, %arg2: memref<1x1024xf32, #tpu.memory_space<vmem>>, %arg3: memref<1x1024xf32, #tpu.memory_space<vmem>>, %arg4: memref<1x1024xf32, #tpu.memory_space<vmem>>, %arg5: memref<1x1024xf32, #tpu.memory_space<vmem>>) attributes {dimension_semantics = [#tpu.dimension_semantics<parallel>], iteration_bounds = array<i64: 1>, scalar_prefetch = 0 : i64, scratch_operands = 0 : i64, tpu.core_type = #tpu.core_type<tc>, window_params = [{transform_indices = @transform_0, window_bounds = array<i64: 3>}, {transform_indices = @transform_1, window_bounds = array<i64: 1, 1024>}, {transform_indices = @transform_2, window_bounds = array<i64: 1, 1024>}, {transform_indices = @transform_3, window_bounds = array<i64: 1, 1024>}, {transform_indices = @transform_4, window_bounds = array<i64: 1, 1024>}]} {
    %c0 = arith.constant 0 : index
    %0 = memref.load %arg1[%c0] : memref<3xf32, #tpu.memory_space<smem>>
    %c1 = arith.constant 1 : index
    %1 = memref.load %arg1[%c1] : memref<3xf32, #tpu.memory_space<smem>>
    %c2 = arith.constant 2 : index
    %2 = memref.load %arg1[%c2] : memref<3xf32, #tpu.memory_space<smem>>
    %c0_0 = arith.constant 0 : index
    %c0_1 = arith.constant 0 : index
    %3 = vector.load %arg2[%c0_0, %c0_1] : memref<1x1024xf32, #tpu.memory_space<vmem>>, vector<1x1024xf32>
    %4 = vector.broadcast %0 : f32 to vector<1x1024xf32>
    %5 = arith.mulf %4, %3 : vector<1x1024xf32>
    %c0_2 = arith.constant 0 : index
    %c0_3 = arith.constant 0 : index
    %6 = vector.load %arg3[%c0_2, %c0_3] : memref<1x1024xf32, #tpu.memory_space<vmem>>, vector<1x1024xf32>
    %7 = vector.broadcast %1 : f32 to vector<1x1024xf32>
    %8 = arith.mulf %7, %6 : vector<1x1024xf32>
    %9 = arith.addf %5, %8 : vector<1x1024xf32>
    %c0_4 = arith.constant 0 : index
    %c0_5 = arith.constant 0 : index
    %10 = vector.load %arg4[%c0_4, %c0_5] : memref<1x1024xf32, #tpu.memory_space<vmem>>, vector<1x1024xf32>
    %11 = vector.broadcast %2 : f32 to vector<1x1024xf32>
    %12 = arith.mulf %11, %10 : vector<1x1024xf32>
    %13 = arith.addf %9, %12 : vector<1x1024xf32>
    %c0_6 = arith.constant 0 : index
    %c0_7 = arith.constant 0 : index
    %14 = vector.load %arg5[%c0_6, %c0_7] : memref<1x1024xf32, #tpu.memory_space<vmem>>, vector<1x1024xf32>
    tpu.vector_store %arg5[%c0_6, %c0_7], %13 {strides = array<i32>} : memref<1x1024xf32, #tpu.memory_space<vmem>>, vector<1x1024xf32>,
    return
  }
  func.func @transform_0(%arg0: i32) -> i32 {
    %c0_i32 = arith.constant 0 : i32
    %c0_i32_0 = arith.constant 0 : i32
    return %c0_i32 : i32
  }
  func.func @transform_1(%arg0: i32) -> (i32, i32) {
    %c0_i32 = arith.constant 0 : i32
    %c0_i32_0 = arith.constant 0 : i32
    return %arg0, %c0_i32 : i32, i32
  }
  func.func @transform_2(%arg0: i32) -> (i32, i32) {
    %c0_i32 = arith.constant 0 : i32
    %c0_i32_0 = arith.constant 0 : i32
    return %arg0, %c0_i32 : i32, i32
  }
  func.func @transform_3(%arg0: i32) -> (i32, i32) {
    %c0_i32 = arith.constant 0 : i32
    %c0_i32_0 = arith.constant 0 : i32
    return %arg0, %c0_i32 : i32, i32
  }
  func.func @transform_4(%arg0: i32) -> (i32, i32) {
    %c0_i32 = arith.constant 0 : i32
    %c0_i32_0 = arith.constant 0 : i32
    return %arg0, %c0_i32 : i32, i32
  }
}

</mosaic_0001>

<llo_original>
// kernel: tpu_custom_call.1
$region0: #{tpu_custom_call.1}
  #allocation0 [shape = 'u32[]', space=smem, size = 0x4, offset = 0x4, fixed_abs, tag = 'smem constant byte address 0x4 - core index']
  #allocation1 [shape = 'u32[144,128]{1,0:T(1,128)}', space=vmem, size = 0x12000, scoped, tag = 'internal scratch']
  %s0 = inlined_call_operand.hbm [shape: f32[3], index: 0, kind: input, shape index: {}]
  %s1 = inlined_call_operand.hbm [shape: f32[1,1024], index: 1, kind: input, shape index: {}]
  %s2 = inlined_call_operand.hbm [shape: f32[1,1024], index: 2, kind: input, shape index: {}]
  %s3 = inlined_call_operand.vmem [shape: f32[1,1024], index: 3, kind: input, shape index: {}]
  %s4 = inlined_call_operand.hbm [shape: f32[1,1024], index: 4, kind: output, shape index: {}]
  %s5 = sld [smem:[#allocation0]]
  $region38: #{tpu_custom_call.1} parent=0
    _
  %s7 = ssub.s32 1, %s5
  %s8 = scalar_select 0, %s7, %s5
  $region1: #{tpu_custom_call.1} parent=0
    #allocation2 [shape = 'u8[512]{0}', space=smem, size = 0x200, scoped, tag = 'input window, operand 0, single buffered']
    #allocation3 [shape = 's32[1]{0}', space=sflag, size = 0x4, scoped, tag = 'scoped memory for tpu_custom_call.1']
    #allocation4 [shape = 's32[1]{0}', space=sflag, size = 0x4, scoped, tag = 'scoped memory for tpu_custom_call.1']
    #allocation5 [shape = 's32[1]{0}', space=sflag, size = 0x4, scoped, tag = 'scoped memory for tpu_custom_call.1']
    #allocation6 [shape = 'u8[4096]{0}', space=vmem, size = 0x1000, scoped, tag = 'input window, operand 1, single buffered']
    #allocation7 [shape = 'u8[4096]{0}', space=vmem, size = 0x1000, scoped, tag = 'input window, operand 2, single buffered']
    #allocation8 [shape = 's32[1]{0}', space=sflag, size = 0x4, scoped, tag = 'scoped memory for tpu_custom_call.1']
    #allocation9 [shape = 'u8[4096]{0}', space=vmem, size = 0x1000, scoped, tag = 'output window, operand 0, single buffered']
    %9 = vsyncpa [#allocation5], 0
    %10 = vsyncpa [#allocation3], 0
    %11 = vsyncpa [#allocation8], 0
    %12 = vsyncpa [#allocation4], 0
    // Predicated region
    $region2: #{tpu_custom_call.1} parent=1 // pred_check
      _
    $region3: #{tpu_custom_call.1} parent=1 // pred_check_branch
      %14 = sbr.rel (0) target = $region5
    $region4: #{tpu_custom_call.1} parent=1 // pred_region
      %s16 = ssub.s32 16, 16
      %17 = vsyncadd [#allocation5], %s16
      %20 = dma.hbm_to_smem %s0, 16, [#allocation2], [#allocation5]
    $region5: #{tpu_custom_call.1} parent=1 // pred_fallthru
      _
    // Predicated region
    $region6: #{tpu_custom_call.1} parent=1 // pred_check
      _
    $region7: #{tpu_custom_call.1} parent=1 // pred_check_branch
      %22 = sbr.rel (0) target = $region9
    $region8: #{tpu_custom_call.1} parent=1 // pred_region
      %s24 = ssub.s32 128, 128
      %25 = vsyncadd [#allocation3], %s24
      %s27 = sshll.u32 [#allocation6], 4
      %s28 = int_to_ptr.vmem [resolvable:$true] %s27
      %30 = dma.hbm_to_vmem [thread:$0]  %s1, 128, %s28, [#allocation3]
    $region9: #{tpu_custom_call.1} parent=1 // pred_fallthru
      _
    // Predicated region
    $region10: #{tpu_custom_call.1} parent=1 // pred_check
      _
    $region11: #{tpu_custom_call.1} parent=1 // pred_check_branch
      %32 = sbr.rel (0) target = $region13
    $region12: #{tpu_custom_call.1} parent=1 // pred_region
      %s34 = ssub.s32 128, 128
      %35 = vsyncadd [#allocation8], %s34
      %s37 = sshll.u32 [#allocation7], 4
      %s38 = int_to_ptr.vmem [resolvable:$true] %s37
      %40 = dma.hbm_to_vmem [thread:$0]  %s2, 128, %s38, [#allocation8]
    $region13: #{tpu_custom_call.1} parent=1 // pred_fallthru
      _
    // Predicated region
    $region14: #{tpu_custom_call.1} parent=1 // pred_check
      _
    $region15: #{tpu_custom_call.1} parent=1 // pred_check_branch
      %42 = sbr.rel (0) target = $region17
    $region16: #{tpu_custom_call.1} parent=1 // pred_region
      _
    $region17: #{tpu_custom_call.1} parent=1 // pred_fallthru
      _
    // Predicated region
    $region18: #{tpu_custom_call.1} parent=1 // pred_check
      _
    $region19: #{tpu_custom_call.1} parent=1 // pred_check_branch
      %44 = sbr.rel (0) target = $region21
    $region20: #{tpu_custom_call.1} parent=1 // pred_region
      %45 = dma.done [#allocation5], 16
    $region21: #{tpu_custom_call.1} parent=1 // pred_fallthru
      _
    // Predicated region
    $region22: #{tpu_custom_call.1} parent=1 // pred_check
      _
    $region23: #{tpu_custom_call.1} parent=1 // pred_check_branch
      %47 = sbr.rel (0) target = $region25
    $region24: #{tpu_custom_call.1} parent=1 // pred_region
      %48 = dma.done [#allocation3], 128
    $region25: #{tpu_custom_call.1} parent=1 // pred_fallthru
      _
    // Predicated region
    $region26: #{tpu_custom_call.1} parent=1 // pred_check
      _
    $region27: #{tpu_custom_call.1} parent=1 // pred_check_branch
      %50 = sbr.rel (0) target = $region29
    $region28: #{tpu_custom_call.1} parent=1 // pred_region
      %51 = dma.done [#allocation8], 128
    $region29: #{tpu_custom_call.1} parent=1 // pred_fallthru
      _
    %52 = sfence
    %s53 = sld [smem:[#allocation2]]
    %s54 = sld [smem:[#allocation2 + $0x1]]
    %s55 = sld [smem:[#allocation2 + $0x2]]
    %v56 = vld [vmem:[#allocation6] sm:$0xff]
    %v57 = vstv %s53
    %v58 = vmul.f32 %v57, %v56
    %v59 = vld [vmem:[#allocation7] sm:$0xff]
    %v60 = vstv %s54
    %v61 = vmul.f32 %v60, %v59
    %v62 = vadd.f32 %v58, %v61
    %v63 = vld [vmem:[%s3] sm:$0xff]
    %v64 = vstv %s55
    %v65 = vmul.f32 %v64, %v63
    %v66 = vadd.f32 %v62, %v65
    %67 = vst [vmem:[#allocation9] sm:$0xff] %v66
    // Predicated region
    $region30: #{tpu_custom_call.1} parent=1 // pred_check
      _
    $region31: #{tpu_custom_call.1} parent=1 // pred_check_branch
      %69 = sbr.rel (0) target = $region33
    $region32: #{tpu_custom_call.1} parent=1 // pred_region
      %s71 = ssub.s32 128, 128
      %72 = vsyncadd [#allocation4], %s71
      %s74 = sshll.u32 [#allocation9], 4
      %s75 = int_to_ptr.vmem [resolvable:$true] %s74
      %77 = dma.vmem_to_hbm [thread:$0]  %s75, 128, %s4, [#allocation4]
    $region33: #{tpu_custom_call.1} parent=1 // pred_fallthru
      _
    // Predicated region
    $region34: #{tpu_custom_call.1} parent=1 // pred_check
      _
    $region35: #{tpu_custom_call.1} parent=1 // pred_check_branch
      %79 = sbr.rel (0) target = $region37
    $region36: #{tpu_custom_call.1} parent=1 // pred_region
      %80 = dma.done [#allocation4], 128
    $region37: #{tpu_custom_call.1} parent=1 // pred_fallthru
      _
    %81 = vsyncpa [#allocation3], 1
    %82 = vsyncpa [#allocation8], 1
    %83 = vsyncpa [#allocation4], 1
    %84 = vsyncpa [#allocation5], 1

</llo_original>
